<compile_context>
chip_gen: v6e
topology: v6e:2x2x1
jax: 0.10.0
libtpu: 0.0.40
codegen_flags: <defaults>
</compile_context>

<pallas_src>
import functools

import jax
import jax.numpy as jnp
from jax.experimental import pallas as pl
from jax.experimental.pallas import tpu as pltpu

LANE = 128
# Conservative VMEM budget that fits every current generation, including
# v7x's 64 MiB-per-TensorCore physical VMEM.
_VMEM_CAP = 56 * 1024 * 1024
# If the (single-buffered) resident weights exceed this, switch to the
# hidden-dim-tiled kernel instead of keeping all weights VMEM-resident.
_RESIDENT_WEIGHT_LIMIT = 28 * 1024 * 1024


def _round_up(x, m):
    return ((x + m - 1) // m) * m


def _sublane(dtype):
    # Sub-32-bit dtypes pack along sublanes (bf16 vreg is [16,128], 8-bit [32,128]).
    return {4: 8, 2: 16, 1: 32}.get(jnp.dtype(dtype).itemsize, 8)


# --------------------------------------------------------------------------
# Kernels
# --------------------------------------------------------------------------
def mlp_kernel_resident(x_ref, w1_ref, b1_ref, w2_ref, b2_ref, o_ref):
    # x_ref:  [tb, dim_in]
    # w1_ref: [dim_in, hid_p]   b1_ref: [1, hid_p]
    # w2_ref: [hid_p,  out_p]   b2_ref: [1, out_p]
    # o_ref:  [tb, out_p]
    x = x_ref[...]
    h = jnp.dot(x, w1_ref[...], preferred_element_type=jnp.float32)
    h = jnp.maximum(h + b1_ref[...].astype(jnp.float32), 0.0)
    h = h.astype(w2_ref.dtype)  # keeps bf16 operands on the bf16 MXU path
    y = jnp.dot(h, w2_ref[...], preferred_element_type=jnp.float32)
    y = y + b2_ref[...].astype(jnp.float32)
    o_ref[...] = y.astype(o_ref.dtype)


def mlp_kernel_ktiled(x_ref, w1_ref, b1_ref, w2_ref, b2_ref, o_ref, acc_ref):
    # grid = (batch tiles, hidden tiles); hidden axis is the reduction.
    k = pl.program_id(1)

    @pl.when(k == 0)
    def _():
        acc_ref[...] = jnp.zeros_like(acc_ref)

    h = jnp.dot(x_ref[...], w1_ref[...], preferred_element_type=jnp.float32)
    h = jnp.maximum(h + b1_ref[...].astype(jnp.float32), 0.0)
    acc_ref[...] += jnp.dot(h.astype(w2_ref.dtype), w2_ref[...],
                            preferred_element_type=jnp.float32)

    @pl.when(k == pl.num_programs(1) - 1)
    def _():
        y = acc_ref[...] + b2_ref[...].astype(jnp.float32)
        o_ref[...] = y.astype(o_ref.dtype)


# --------------------------------------------------------------------------
# One-time parameter preparation (PyTorch layout -> TPU-friendly layout)
# --------------------------------------------------------------------------
def prepare_params(w1, b1, w2, b2, compute_dtype=None):
    """One-time conversion of PyTorch-layout Linear params.

    w1: [dim_hidden, dim_in]  b1: [dim_hidden]
    w2: [dim_out, dim_hidden] b2: [dim_out]

    Weights are stored persistently as [in, out]; BOTH dim_hidden and dim_out
    are zero-padded up to a multiple of 128 so every intermediate / output is
    lane-dense.  Padded hidden units are exact no-ops (ReLU(0+0)=0 and the
    matching w2 rows are zero).  Do this at model init, not per forward call.
    """
    w1 = jnp.asarray(w1)
    b1 = jnp.asarray(b1)
    w2 = jnp.asarray(w2)
    b2 = jnp.asarray(b2)
    dt = jnp.dtype(compute_dtype) if compute_dtype is not None else w1.dtype

    dim_hidden, dim_in = w1.shape
    dim_out, _ = w2.shape
    hid_p = _round_up(max(dim_hidden, LANE), LANE)
    out_p = _round_up(max(dim_out, LANE), LANE)

    w1_io = jnp.zeros((dim_in, hid_p), dt).at[:, :dim_hidden].set(w1.astype(dt).T)
    b1_r = jnp.zeros((1, hid_p), dt).at[:, :dim_hidden].set(b1.astype(dt))
    w2_io = jnp.zeros((hid_p, out_p), dt).at[:dim_hidden, :dim_out].set(w2.astype(dt).T)
    b2_r = jnp.zeros((1, out_p), dt).at[:, :dim_out].set(b2.astype(dt))
    return (w1_io, b1_r, w2_io, b2_r, dim_out)


# --------------------------------------------------------------------------
# pallas_call builders
# --------------------------------------------------------------------------
def _resident_call(x2d, w1_io, b1_r, w2_io, b2_r, tb, n_tiles, out_p,
                   single_buffer):
    B, dim_in = x2d.shape
    hid_p = w1_io.shape[1]
    itemsize = jnp.dtype(x2d.dtype).itemsize
    w_item = jnp.dtype(w1_io.dtype).itemsize

    weight_bytes = (w1_io.size + b1_r.size + w2_io.size + b2_r.size) * w_item
    wb_mult = 1 if single_buffer else 2
    working = (wb_mult * weight_bytes
               + 2 * tb * dim_in * itemsize       # x, double-buffered
               + 2 * tb * out_p * itemsize        # out, double-buffered
               + tb * (hid_p + out_p) * 4)        # f32 intermediates
    vmem_limit = min(_VMEM_CAP, max(32 << 20, int(working * 1.25)))

    pm = dict(pipeline_mode=pl.Buffered(1)) if single_buffer else {}
    in_specs = [
        # x: tiled over batch -> auto double-buffered across grid steps.
        pl.BlockSpec((tb, dim_in), lambda i: (i, 0)),
        # Weights / biases: constant block index -> fetched once, VMEM-resident.
        pl.BlockSpec((dim_in, hid_p), lambda i: (0, 0), **pm),
        pl.BlockSpec((1, hid_p), lambda i: (0, 0), **pm),
        pl.BlockSpec((hid_p, out_p), lambda i: (0, 0), **pm),
        pl.BlockSpec((1, out_p), lambda i: (0, 0), **pm),
    ]
    cost = pl.CostEstimate(
        flops=2 * B * (dim_in * hid_p + hid_p * out_p),
        transcendentals=0,
        bytes_accessed=(x2d.size * itemsize + weight_bytes
                        + B * out_p * itemsize),
    )
    return pl.pallas_call(
        mlp_kernel_resident,
        out_shape=jax.ShapeDtypeStruct((B, out_p), x2d.dtype),
        grid=(n_tiles,),
        in_specs=in_specs,
        out_specs=pl.BlockSpec((tb, out_p), lambda i: (i, 0)),
        compiler_params=pltpu.CompilerParams(
            dimension_semantics=("parallel",),
            vmem_limit_bytes=vmem_limit),
        cost_estimate=cost,
    )(x2d, w1_io, b1_r, w2_io, b2_r)


def _ktiled_call(x2d, w1_io, b1_r, w2_io, b2_r, tb, n_tiles, out_p, tk,
                 single_buffer):
    B, dim_in = x2d.shape
    hid_p = w1_io.shape[1]
    nk = hid_p // tk
    itemsize = jnp.dtype(x2d.dtype).itemsize
    w_item = jnp.dtype(w1_io.dtype).itemsize

    working = (2 * (dim_in * tk + tk + tk * out_p) * w_item   # streamed weights
               + (1 if single_buffer else 2) * out_p * w_item  # b2
               + 2 * tb * dim_in * itemsize                    # x
               + 2 * tb * out_p * itemsize                     # out
               + tb * out_p * 4                                # accumulator
               + tb * tk * 4)                                  # h intermediate
    vmem_limit = min(_VMEM_CAP, max(32 << 20, int(working * 1.25)))

    pm = dict(pipeline_mode=pl.Buffered(1)) if single_buffer else {}
    in_specs = [
        pl.BlockSpec((tb, dim_in), lambda i, k: (i, 0)),
        pl.BlockSpec((dim_in, tk), lambda i, k: (0, k)),
        pl.BlockSpec((1, tk), lambda i, k: (0, k)),
        pl.BlockSpec((tk, out_p), lambda i, k: (k, 0)),
        pl.BlockSpec((1, out_p), lambda i, k: (0, 0), **pm),
    ]
    cost = pl.CostEstimate(
        flops=2 * B * (dim_in * hid_p + hid_p * out_p),
        transcendentals=0,
        bytes_accessed=(x2d.size * itemsize
                        + n_tiles * (w1_io.size + w2_io.size) * w_item
                        + B * out_p * itemsize),
    )
    return pl.pallas_call(
        mlp_kernel_ktiled,
        out_shape=jax.ShapeDtypeStruct((B, out_p), x2d.dtype),
        grid=(n_tiles, nk),
        in_specs=in_specs,
        out_specs=pl.BlockSpec((tb, out_p), lambda i, k: (i, 0)),
        scratch_shapes=[pltpu.VMEM((tb, out_p), jnp.float32)],
        compiler_params=pltpu.CompilerParams(
            dimension_semantics=("parallel", "arbitrary"),
            vmem_limit_bytes=vmem_limit),
        cost_estimate=cost,
    )(x2d, w1_io, b1_r, w2_io, b2_r)


# --------------------------------------------------------------------------
# Forward wrapper
# --------------------------------------------------------------------------
def mlp_forward(x, params, tb=512, hidden_tile=512, force_hidden_tiled=False,
                keep_padded_output=False):
    """x: [B, *feature_dims]; params from prepare_params(). Returns [B, dim_out]."""
    w1_io, b1_r, w2_io, b2_r, dim_out = params
    B = x.shape[0]
    x2d = x.reshape(B, -1).astype(w1_io.dtype)   # x.view(x.size(0), -1)
    dim_in = x2d.shape[1]
    hid_p = w1_io.shape[1]
    out_p = w2_io.shape[1]
    assert w1_io.shape[0] == dim_in, "flattened input dim mismatch"

    # Batch-tile selection: dtype-dependent sublane alignment, and keep at
    # least 2 tiles for small batches so both v7x TensorCores get work.
    sub = _sublane(x2d.dtype)
    if B <= tb:
        half = _round_up(pl.cdiv(B, 2), sub)
        tb = half if half < B else B
    else:
        tb = _round_up(min(tb, B), sub)
    n_tiles = pl.cdiv(B, tb)   # ragged last block handled by Pallas (no jnp.pad)

    w_item = jnp.dtype(w1_io.dtype).itemsize
    weight_bytes = (w1_io.size + b1_r.size + w2_io.size + b2_r.size) * w_item
    use_ktiled = force_hidden_tiled or weight_bytes > _RESIDENT_WEIGHT_LIMIT

    if use_ktiled:
        # Hidden-tile size must divide hid_p exactly (accumulation must not see
        # out-of-bounds garbage); hid_p is a multiple of 128 so this terminates.
        tk = min(_round_up(min(hidden_tile, hid_p), LANE), hid_p)
        while hid_p % tk:
            tk -= LANE
        runner = functools.partial(_ktiled_call, x2d, w1_io, b1_r, w2_io, b2_r,
                                   tb, n_tiles, out_p, tk)
    else:
        runner = functools.partial(_resident_call, x2d, w1_io, b1_r, w2_io, b2_r,
                                   tb, n_tiles, out_p)

    try:
        out = runner(single_buffer=True)
    except Exception:
        # Older jax may reject pl.Buffered(1); retry with default buffering.
        out = runner(single_buffer=False)

    if keep_padded_output:
        # [B, out_p] lane-dense output; lets downstream consumers skip an
        # extra HBM slice pass when dim_out << 128.
        return out
    return out[:, :dim_out]


# --------------------------------------------------------------------------
# Self-test
# --------------------------------------------------------------------------
if __name__ == "__main__":
    C, H, W = 4, 4, 4
    dim_in = C * H * W        # 64 after flatten
    dim_hidden = 32
    dim_out = 16

    key = jax.random.PRNGKey(0)
    kx, kw1, kb1, kw2, kb2 = jax.random.split(key, 5)

    # PyTorch Linear layout: weight [out_features, in_features], bias [out_features].
    w1 = jax.random.normal(kw1, (dim_hidden, dim_in), dtype=jnp.float32) * 0.05
    b1 = jax.random.normal(kb1, (dim_hidden,), dtype=jnp.float32) * 0.05
    w2 = jax.random.normal(kw2, (dim_out, dim_hidden), dtype=jnp.float32) * 0.05
    b2 = jax.random.normal(kb2, (dim_out,), dtype=jnp.float32) * 0.05

    params = prepare_params(w1, b1, w2, b2)   # one-time layout conversion

    def ref_fn(xin):
        x2 = xin.reshape(xin.shape[0], -1)
        return jnp.maximum(x2 @ w1.T + b1, 0.0) @ w2.T + b2

    # 1) resident-weight path; B=128 splits into 2 batch tiles (dual-TC on v7x).
    x = jax.random.normal(kx, (128, C, H, W), dtype=jnp.float32)
    y = jax.block_until_ready(mlp_forward(x, params))
    assert y.shape == (128, dim_out)
    assert jnp.allclose(y, ref_fn(x), atol=1e-5, rtol=1e-5), "resident path mismatch"

    # 2) hidden-dim-tiled fallback (auto-selected for weights too big for v7x
    #    VMEM; forced here so it is exercised at small shapes too).
    y2 = jax.block_until_ready(
        mlp_forward(x, params, force_hidden_tiled=True, hidden_tile=128))
    assert jnp.allclose(y2, ref_fn(x), atol=1e-5, rtol=1e-5), "k-tiled path mismatch"

    # 3) ragged batch (B % tb != 0): no wrapper-side jnp.pad; Pallas masks the
    #    boundary block's writeback.
    kx2 = jax.random.split(kx)[0]
    xr = jax.random.normal(kx2, (100, C, H, W), dtype=jnp.float32)
    y3 = jax.block_until_ready(mlp_forward(xr, params))
    assert y3.shape == (100, dim_out)
    assert jnp.allclose(y3, ref_fn(xr), atol=1e-5, rtol=1e-5), "ragged batch mismatch"

    print("KERNEL_OK")
</pallas_src>

<mosaic_0001>
module attributes {stable_mosaic.version = 11 : i64} {
  func.func @mlp_kernel_resident(%arg0: i32, %arg1: memref<64x64xf32, #tpu.memory_space<vmem>>, %arg2: memref<64x128xf32, #tpu.memory_space<vmem>>, %arg3: memref<1x128xf32, #tpu.memory_space<vmem>>, %arg4: memref<128x128xf32, #tpu.memory_space<vmem>>, %arg5: memref<1x128xf32, #tpu.memory_space<vmem>>, %arg6: memref<64x128xf32, #tpu.memory_space<vmem>>) attributes {dimension_semantics = [#tpu.dimension_semantics<parallel>], iteration_bounds = array<i64: 2>, scalar_prefetch = 0 : i64, scratch_operands = 0 : i64, tpu.core_type = #tpu.core_type<tc>, window_params = [{transform_indices = @transform_0, window_bounds = array<i64: 64, 64>}, {pipeline_mode = #tpu.pipeline_mode<synchronous>, transform_indices = @transform_1, window_bounds = array<i64: 64, 128>}, {pipeline_mode = #tpu.pipeline_mode<synchronous>, transform_indices = @transform_2, window_bounds = array<i64: 1, 128>}, {pipeline_mode = #tpu.pipeline_mode<synchronous>, transform_indices = @transform_3, window_bounds = array<i64: 128, 128>}, {pipeline_mode = #tpu.pipeline_mode<synchronous>, transform_indices = @transform_4, window_bounds = array<i64: 1, 128>}, {transform_indices = @transform_5, window_bounds = array<i64: 64, 128>}]} {
    %c0 = arith.constant 0 : index
    %c0_0 = arith.constant 0 : index
    %0 = vector.load %arg1[%c0, %c0_0] : memref<64x64xf32, #tpu.memory_space<vmem>>, vector<64x64xf32>
    %c0_1 = arith.constant 0 : index
    %c0_2 = arith.constant 0 : index
    %1 = vector.load %arg2[%c0_1, %c0_2] : memref<64x128xf32, #tpu.memory_space<vmem>>, vector<64x128xf32>
    %cst = arith.constant dense<0.000000e+00> : vector<64x128xf32>
    %2 = tpu.matmul %0, %1, %cst {dimension_numbers = #tpu.dot_dimension_numbers<[1], [0], [0], [1], [0, 0, 1, 1], [], []>} : vector<64x64xf32>, vector<64x128xf32>, vector<64x128xf32> -> vector<64x128xf32>
    %c0_3 = arith.constant 0 : index
    %c0_4 = arith.constant 0 : index
    %3 = vector.load %arg3[%c0_3, %c0_4] : memref<1x128xf32, #tpu.memory_space<vmem>>, vector<1x128xf32>
    %4 = vector.broadcast %3 : vector<1x128xf32> to vector<64x128xf32>
    %5 = arith.addf %2, %4 : vector<64x128xf32>
    %cst_5 = arith.constant 0.000000e+00 : f32
    %6 = vector.broadcast %cst_5 : f32 to vector<64x128xf32>
    %7 = arith.maximumf %5, %6 : vector<64x128xf32>
    %c0_6 = arith.constant 0 : index
    %c0_7 = arith.constant 0 : index
    %8 = vector.load %arg4[%c0_6, %c0_7] : memref<128x128xf32, #tpu.memory_space<vmem>>, vector<128x128xf32>
    %cst_8 = arith.constant dense<0.000000e+00> : vector<64x128xf32>
    %9 = tpu.matmul %7, %8, %cst_8 {dimension_numbers = #tpu.dot_dimension_numbers<[1], [0], [0], [1], [0, 0, 1, 1], [], []>} : vector<64x128xf32>, vector<128x128xf32>, vector<64x128xf32> -> vector<64x128xf32>
    %c0_9 = arith.constant 0 : index
    %c0_10 = arith.constant 0 : index
    %10 = vector.load %arg5[%c0_9, %c0_10] : memref<1x128xf32, #tpu.memory_space<vmem>>, vector<1x128xf32>
    %11 = vector.broadcast %10 : vector<1x128xf32> to vector<64x128xf32>
    %12 = arith.addf %9, %11 : vector<64x128xf32>
    %c0_11 = arith.constant 0 : index
    %c0_12 = arith.constant 0 : index
    %13 = vector.load %arg6[%c0_11, %c0_12] : memref<64x128xf32, #tpu.memory_space<vmem>>, vector<64x128xf32>
    tpu.vector_store %arg6[%c0_11, %c0_12], %12 {strides = array<i32>} : memref<64x128xf32, #tpu.memory_space<vmem>>, vector<64x128xf32>,
    return
  }
  func.func @transform_0(%arg0: i32) -> (i32, i32) {
    %c0_i32 = arith.constant 0 : i32
    %c0_i32_0 = arith.constant 0 : i32
    return %arg0, %c0_i32 : i32, i32
  }
  func.func @transform_1(%arg0: i32) -> (i32, i32) {
    %c0_i32 = arith.constant 0 : i32
    %c0_i32_0 = arith.constant 0 : i32
    %c0_i32_1 = arith.constant 0 : i32
    return %c0_i32, %c0_i32_0 : i32, i32
  }
  func.func @transform_2(%arg0: i32) -> (i32, i32) {
    %c0_i32 = arith.constant 0 : i32
    %c0_i32_0 = arith.constant 0 : i32
    %c0_i32_1 = arith.constant 0 : i32
    return %c0_i32, %c0_i32_0 : i32, i32
  }
  func.func @transform_3(%arg0: i32) -> (i32, i32) {
    %c0_i32 = arith.constant 0 : i32
    %c0_i32_0 = arith.constant 0 : i32
    %c0_i32_1 = arith.constant 0 : i32
    return %c0_i32, %c0_i32_0 : i32, i32
  }
  func.func @transform_4(%arg0: i32) -> (i32, i32) {
    %c0_i32 = arith.constant 0 : i32
    %c0_i32_0 = arith.constant 0 : i32
    %c0_i32_1 = arith.constant 0 : i32
    return %c0_i32, %c0_i32_0 : i32, i32
  }
  func.func @transform_5(%arg0: i32) -> (i32, i32) {
    %c0_i32 = arith.constant 0 : i32
    %c0_i32_0 = arith.constant 0 : i32
    return %arg0, %c0_i32 : i32, i32
  }
}

module attributes {stable_mosaic.version = 11 : i64} {
  func.func @mlp_kernel_resident(%arg0: i32, %arg1: memref<64x64xf32, #tpu.memory_space<vmem>>, %arg2: memref<64x128xf32, #tpu.memory_space<vmem>>, %arg3: memref<1x128xf32, #tpu.memory_space<vmem>>, %arg4: memref<128x128xf32, #tpu.memory_space<vmem>>, %arg5: memref<1x128xf32, #tpu.memory_space<vmem>>, %arg6: memref<64x128xf32, #tpu.memory_space<vmem>>) attributes {dimension_semantics = [#tpu.dimension_semantics<parallel>], iteration_bounds = array<i64: 2>, scalar_prefetch = 0 : i64, scratch_operands = 0 : i64, tpu.core_type = #tpu.core_type<tc>, window_params = [{transform_indices = @transform_0, window_bounds = array<i64: 64, 64>}, {pipeline_mode = #tpu.pipeline_mode<synchronous>, transform_indices = @transform_1, window_bounds = array<i64: 64, 128>}, {pipeline_mode = #tpu.pipeline_mode<synchronous>, transform_indices = @transform_2, window_bounds = array<i64: 1, 128>}, {pipeline_mode = #tpu.pipeline_mode<synchronous>, transform_indices = @transform_3, window_bounds = array<i64: 128, 128>}, {pipeline_mode = #tpu.pipeline_mode<synchronous>, transform_indices = @transform_4, window_bounds = array<i64: 1, 128>}, {transform_indices = @transform_5, window_bounds = array<i64: 64, 128>}]} {
    %c0 = arith.constant 0 : index
    %c0_0 = arith.constant 0 : index
    %0 = vector.load %arg1[%c0, %c0_0] : memref<64x64xf32, #tpu.memory_space<vmem>>, vector<64x64xf32>
    %c0_1 = arith.constant 0 : index
    %c0_2 = arith.constant 0 : index
    %1 = vector.load %arg2[%c0_1, %c0_2] : memref<64x128xf32, #tpu.memory_space<vmem>>, vector<64x128xf32>
    %cst = arith.constant dense<0.000000e+00> : vector<64x128xf32>
    %2 = tpu.matmul %0, %1, %cst {dimension_numbers = #tpu.dot_dimension_numbers<[1], [0], [0], [1], [0, 0, 1, 1], [], []>} : vector<64x64xf32>, vector<64x128xf32>, vector<64x128xf32> -> vector<64x128xf32>
    %c0_3 = arith.constant 0 : index
    %c0_4 = arith.constant 0 : index
    %3 = vector.load %arg3[%c0_3, %c0_4] : memref<1x128xf32, #tpu.memory_space<vmem>>, vector<1x128xf32>
    %4 = vector.broadcast %3 : vector<1x128xf32> to vector<64x128xf32>
    %5 = arith.addf %2, %4 : vector<64x128xf32>
    %cst_5 = arith.constant 0.000000e+00 : f32
    %6 = vector.broadcast %cst_5 : f32 to vector<64x128xf32>
    %7 = arith.maximumf %5, %6 : vector<64x128xf32>
    %c0_6 = arith.constant 0 : index
    %c0_7 = arith.constant 0 : index
    %8 = vector.load %arg4[%c0_6, %c0_7] : memref<128x128xf32, #tpu.memory_space<vmem>>, vector<128x128xf32>
    %cst_8 = arith.constant dense<0.000000e+00> : vector<64x128xf32>
    %9 = tpu.matmul %7, %8, %cst_8 {dimension_numbers = #tpu.dot_dimension_numbers<[1], [0], [0], [1], [0, 0, 1, 1], [], []>} : vector<64x128xf32>, vector<128x128xf32>, vector<64x128xf32> -> vector<64x128xf32>
    %c0_9 = arith.constant 0 : index
    %c0_10 = arith.constant 0 : index
    %10 = vector.load %arg5[%c0_9, %c0_10] : memref<1x128xf32, #tpu.memory_space<vmem>>, vector<1x128xf32>
    %11 = vector.broadcast %10 : vector<1x128xf32> to vector<64x128xf32>
    %12 = arith.addf %9, %11 : vector<64x128xf32>
    %c0_11 = arith.constant 0 : index
    %c0_12 = arith.constant 0 : index
    %13 = vector.load %arg6[%c0_11, %c0_12] : memref<64x128xf32, #tpu.memory_space<vmem>>, vector<64x128xf32>
    tpu.vector_store %arg6[%c0_11, %c0_12], %12 {strides = array<i32>} : memref<64x128xf32, #tpu.memory_space<vmem>>, vector<64x128xf32>,
    return
  }
  func.func @transform_0(%arg0: i32) -> (i32, i32) {
    %c0_i32 = arith.constant 0 : i32
    %c0_i32_0 = arith.constant 0 : i32
    return %arg0, %c0_i32 : i32, i32
  }
  func.func @transform_1(%arg0: i32) -> (i32, i32) {
    %c0_i32 = arith.constant 0 : i32
    %c0_i32_0 = arith.constant 0 : i32
    %c0_i32_1 = arith.constant 0 : i32
    return %c0_i32, %c0_i32_0 : i32, i32
  }
  func.func @transform_2(%arg0: i32) -> (i32, i32) {
    %c0_i32 = arith.constant 0 : i32
    %c0_i32_0 = arith.constant 0 : i32
    %c0_i32_1 = arith.constant 0 : i32
    return %c0_i32, %c0_i32_0 : i32, i32
  }
  func.func @transform_3(%arg0: i32) -> (i32, i32) {
    %c0_i32 = arith.constant 0 : i32
    %c0_i32_0 = arith.constant 0 : i32
    %c0_i32_1 = arith.constant 0 : i32
    return %c0_i32, %c0_i32_0 : i32, i32
  }
  func.func @transform_4(%arg0: i32) -> (i32, i32) {
    %c0_i32 = arith.constant 0 : i32
    %c0_i32_0 = arith.constant 0 : i32
    %c0_i32_1 = arith.constant 0 : i32
    return %c0_i32, %c0_i32_0 : i32, i32
  }
  func.func @transform_5(%arg0: i32) -> (i32, i32) {
    %c0_i32 = arith.constant 0 : i32
    %c0_i32_0 = arith.constant 0 : i32
    return %arg0, %c0_i32 : i32, i32
  }
}

</mosaic_0001>

<llo_original>
// kernel: tpu_custom_call.1
$region0: #{tpu_custom_call.1}
  #allocation0 [shape = 'u32[]', space=smem, size = 0x4, offset = 0x4, fixed_abs, tag = 'smem constant byte address 0x4 - core index']
  #allocation1 [shape = 'u32[144,128]{1,0:T(1,128)}', space=vmem, size = 0x12000, scoped, tag = 'internal scratch']
  %s0 = inlined_call_operand.vmem [shape: f32[128,64], index: 0, kind: input, shape index: {}]
  %s1 = inlined_call_operand.vmem [shape: f32[64,128], index: 1, kind: input, shape index: {}]
  %s2 = inlined_call_operand.vmem [shape: f32[1,128], index: 2, kind: input, shape index: {}]
  %s3 = inlined_call_operand.vmem [shape: f32[128,128], index: 3, kind: input, shape index: {}]
  %s4 = inlined_call_operand.vmem [shape: f32[1,128], index: 4, kind: input, shape index: {}]
  %s5 = inlined_call_operand.hbm [shape: f32[128,128], index: 5, kind: output, shape index: {}]
  %s6 = sld [smem:[#allocation0]]
  $region53: #{tpu_custom_call.1} parent=0
    _
  %s8 = ssub.s32 1, %s6
  %s9 = scalar_select 0, %s8, %s6
  $region1: #{tpu_custom_call.1} parent=0
    #allocation2 [shape = 'u8[65536]{0}', space=vmem, size = 0x10000, scoped, tag = 'output window, operand 0']
    #allocation3 [shape = 's32[2]{0}', space=sflag, size = 0x8, scoped, tag = 'scoped memory for tpu_custom_call.1']
    %10 = vsyncpa [#allocation3], 0
    %s11 = scalar_lea.sflag [#allocation3], 1
    %12 = vsyncpa %s11, 0
    loop: start=0, step=1, limit=4
    $region2: #{tpu_custom_call.1} parent=1 // loop_pre_header
      _
    $region3: #{tpu_custom_call.1} parent=1 // loop_header
      %s14 = sphi 0, %s18
      %p15 = scmp.ge.s32.totalorder %s14, 4
      %s24 = sphi 0, %s26
      %s27 = sphi 0, %s24
      %s28 = sphi 0, %s27
      %s44 = sphi 0, %s28
      %s48 = sphi 0, %s48
      %s50 = sphi 0, %s48
      %s51 = sphi 0, %s50
      %s65 = sphi 0, %s51
      %s69 = sphi 0, %s69
      %s71 = sphi 0, %s69
      %s72 = sphi 0, %s71
      %s86 = sphi 0, %s72
      %s90 = sphi 0, %s90
      %s92 = sphi 0, %s90
      %s93 = sphi 0, %s92
      %s107 = sphi 0, %s93
      %s111 = sphi 0, %s111
      %s113 = sphi 0, %s111
      %s114 = sphi 0, %s113
      %s128 = sphi 0, %s114
      %s134 = sphi 0, %s136
      %s137 = sphi 0, %s134
      %s138 = sphi 0, %s137
      %s154 = sphi 0, %s138
    $region4: #{tpu_custom_call.1} parent=1 // loop_header_branch
      %17 = sbr.rel (%p15) target = $region8
    $region5: #{tpu_custom_call.1} parent=1 // loop_body
      %s19 = ssub.s32 %s14, 1
      %s20 = ssub.s32 %s14, 2
      %s21 = sadd.s32 %s14, 1
      %s22 = ssub.s32 %s14, %s21
      %p23 = scmp.eq.s32.totalorder %s22, 0
      %s25 = sadd.s32 %s24, 1
      %s26 = scalar_select %p23, %s24, %s25
      %p29 = pneg %p23
      %p30 = scmp.eq.s32.totalorder %s14, 1
      %p31 = por %p29, %p30
      %p32 = scmp.ne.s32.totalorder %s24, %s27
      %p33 = scmp.eq.s32.totalorder %s14, 0
      %p34 = por %p32, %p33
      %p35 = scmp.ne.s32.totalorder %s24, %s27
      %p36 = scmp.eq.s32.totalorder %s19, 1
      %p37 = por %p35, %p36
      %p38 = scmp.ne.s32.totalorder %s27, %s28
      %p39 = scmp.eq.s32.totalorder %s19, 0
      %p40 = por %p38, %p39
      %p41 = scmp.ne.s32.totalorder %s27, %s28
      %p42 = scmp.eq.s32.totalorder %s20, 1
      %p43 = por %p41, %p42
      %p45 = scmp.ne.s32.totalorder %s28, %s44
      %p46 = scmp.eq.s32.totalorder %s20, 0
      %p47 = por %p45, %p46
      %s49 = sadd.s32 %s48, 1
      %p52 = scmp.eq.s32.totalorder %s14, 1
      %p53 = scmp.ne.s32.totalorder %s48, %s50
      %p54 = scmp.eq.s32.totalorder %s14, 0
      %p55 = por %p53, %p54
      %p56 = scmp.ne.s32.totalorder %s48, %s50
      %p57 = scmp.eq.s32.totalorder %s19, 1
      %p58 = por %p56, %p57
      %p59 = scmp.ne.s32.totalorder %s50, %s51
      %p60 = scmp.eq.s32.totalorder %s19, 0
      %p61 = por %p59, %p60
      %p62 = scmp.ne.s32.totalorder %s50, %s51
      %p63 = scmp.eq.s32.totalorder %s20, 1
      %p64 = por %p62, %p63
      %p66 = scmp.ne.s32.totalorder %s51, %s65
      %p67 = scmp.eq.s32.totalorder %s20, 0
      %p68 = por %p66, %p67
      %s70 = sadd.s32 %s69, 1
      %p73 = scmp.eq.s32.totalorder %s14, 1
      %p74 = scmp.ne.s32.totalorder %s69, %s71
      %p75 = scmp.eq.s32.totalorder %s14, 0
      %p76 = por %p74, %p75
      %p77 = scmp.ne.s32.totalorder %s69, %s71
      %p78 = scmp.eq.s32.totalorder %s19, 1
      %p79 = por %p77, %p78
      %p80 = scmp.ne.s32.totalorder %s71, %s72
      %p81 = scmp.eq.s32.totalorder %s19, 0
      %p82 = por %p80, %p81
      %p83 = scmp.ne.s32.totalorder %s71, %s72
      %p84 = scmp.eq.s32.totalorder %s20, 1
      %p85 = por %p83, %p84
      %p87 = scmp.ne.s32.totalorder %s72, %s86
      %p88 = scmp.eq.s32.totalorder %s20, 0
      %p89 = por %p87, %p88
      %s91 = sadd.s32 %s90, 1
      %p94 = scmp.eq.s32.totalorder %s14, 1
      %p95 = scmp.ne.s32.totalorder %s90, %s92
      %p96 = scmp.eq.s32.totalorder %s14, 0
      %p97 = por %p95, %p96
      %p98 = scmp.ne.s32.totalorder %s90, %s92
      %p99 = scmp.eq.s32.totalorder %s19, 1
      %p100 = por %p98, %p99
      %p101 = scmp.ne.s32.totalorder %s92, %s93
      %p102 = scmp.eq.s32.totalorder %s19, 0
      %p103 = por %p101, %p102
      %p104 = scmp.ne.s32.totalorder %s92, %s93
      %p105 = scmp.eq.s32.totalorder %s20, 1
      %p106 = por %p104, %p105
      %p108 = scmp.ne.s32.totalorder %s93, %s107
      %p109 = scmp.eq.s32.totalorder %s20, 0
      %p110 = por %p108, %p109
      %s112 = sadd.s32 %s111, 1
      %p115 = scmp.eq.s32.totalorder %s14, 1
      %p116 = scmp.ne.s32.totalorder %s111, %s113
      %p117 = scmp.eq.s32.totalorder %s14, 0
      %p118 = por %p116, %p117
      %p119 = scmp.ne.s32.totalorder %s111, %s113
      %p120 = scmp.eq.s32.totalorder %s19, 1
      %p121 = por %p119, %p120
      %p122 = scmp.ne.s32.totalorder %s113, %s114
      %p123 = scmp.eq.s32.totalorder %s19, 0
      %p124 = por %p122, %p123
      %p125 = scmp.ne.s32.totalorder %s113, %s114
      %p126 = scmp.eq.s32.totalorder %s20, 1
      %p127 = por %p125, %p126
      %p129 = scmp.ne.s32.totalorder %s114, %s128
      %p130 = scmp.eq.s32.totalorder %s20, 0
      %p131 = por %p129, %p130
      %s132 = ssub.s32 %s14, %s21
      %p133 = scmp.eq.s32.totalorder %s132, 0
      %s135 = sadd.s32 %s134, 1
      %s136 = scalar_select %p133, %s134, %s135
      %p139 = pneg %p133
      %p140 = scmp.eq.s32.totalorder %s14, 1
      %p141 = por %p139, %p140
      %p142 = scmp.ne.s32.totalorder %s134, %s137
      %p143 = scmp.eq.s32.totalorder %s14, 0
      %p144 = por %p142, %p143
      %p145 = scmp.ne.s32.totalorder %s134, %s137
      %p146 = scmp.eq.s32.totalorder %s19, 1
      %p147 = por %p145, %p146
      %p148 = scmp.ne.s32.totalorder %s137, %s138
      %p149 = scmp.eq.s32.totalorder %s19, 0
      %p150 = por %p148, %p149
      %p151 = scmp.ne.s32.totalorder %s137, %s138
      %p152 = scmp.eq.s32.totalorder %s20, 1
      %p153 = por %p151, %p152
      %p155 = scmp.ne.s32.totalorder %s138, %s154
      %p156 = scmp.eq.s32.totalorder %s20, 0
      %p157 = por %p155, %p156
      %p158 = scmp.le.s32.totalorder 1, %s14
      %p159 = scmp.lt.s32.totalorder %s14, 3
      %p160 = pnand %p158, %p159
      %p161 = pneg %p160
      // Predicated region
      $region9: #{tpu_custom_call.1} parent=5 // pred_check
        _
      $region10: #{tpu_custom_call.1} parent=5 // pred_check_branch
        %163 = sbr.rel (%p160) target = $region12
      $region11: #{tpu_custom_call.1} parent=5 // pred_region
        %s164 = ssub.s32 %s14, 1
        // Predicated region
        $region13: #{tpu_custom_call.1} parent=11 // pred_check
          %p165 = pneg %p61
        $region14: #{tpu_custom_call.1} parent=11 // pred_check_branch
          %167 = sbr.rel (%p165) target = $region16
        $region15: #{tpu_custom_call.1} parent=11 // pred_region
          _
        $region16: #{tpu_custom_call.1} parent=11 // pred_fallthru
          _
        // Predicated region
        $region17: #{tpu_custom_call.1} parent=11 // pred_check
          %p168 = pneg %p82
        $region18: #{tpu_custom_call.1} parent=11 // pred_check_branch
          %170 = sbr.rel (%p168) target = $region20
        $region19: #{tpu_custom_call.1} parent=11 // pred_region
          _
        $region20: #{tpu_custom_call.1} parent=11 // pred_fallthru
          _
        // Predicated region
        $region21: #{tpu_custom_call.1} parent=11 // pred_check
          %p171 = pneg %p103
        $region22: #{tpu_custom_call.1} parent=11 // pred_check_branch
          %173 = sbr.rel (%p171) target = $region24
        $region23: #{tpu_custom_call.1} parent=11 // pred_region
          _
        $region24: #{tpu_custom_call.1} parent=11 // pred_fallthru
          _
        // Predicated region
        $region25: #{tpu_custom_call.1} parent=11 // pred_check
          %p174 = pneg %p124
        $region26: #{tpu_custom_call.1} parent=11 // pred_check_branch
          %176 = sbr.rel (%p174) target = $region28
        $region27: #{tpu_custom_call.1} parent=11 // pred_region
          _
        $region28: #{tpu_custom_call.1} parent=11 // pred_fallthru
          _
      $region12: #{tpu_custom_call.1} parent=5 // pred_fallthru
        _
      %p177 = scmp.lt.s32.totalorder %s14, 2
      // Predicated region
      $region29: #{tpu_custom_call.1} parent=5 // pred_check
        %p178 = pneg %p177
      $region30: #{tpu_custom_call.1} parent=5 // pred_check_branch
        %180 = sbr.rel (%p178) target = $region32
      $region31: #{tpu_custom_call.1} parent=5 // pred_region
        // Predicated region
        $region33: #{tpu_custom_call.1} parent=31 // pred_check
          %p181 = pneg %p34
        $region34: #{tpu_custom_call.1} parent=31 // pred_check_branch
          %183 = sbr.rel (%p181) target = $region36
        $region35: #{tpu_custom_call.1} parent=31 // pred_region
          %s184 = smul.u32 8, %s14
          %p185 = scmp.lt.s32.totalorder %s184, 15
          %s186 = scalar_select %p185, %s184, 15
          %s187 = smul.addr %s186, 8
          %s188 = scalar_lea.vmem %s0, %s187
          %s189 = smul.u32 8, %s14
        $region36: #{tpu_custom_call.1} parent=31 // pred_fallthru
          _
      $region32: #{tpu_custom_call.1} parent=5 // pred_fallthru
        _
      %p190 = scmp.le.s32.totalorder 1, %s14
      %p191 = scmp.lt.s32.totalorder %s14, 3
      %p192 = pnand %p190, %p191
      %p193 = pneg %p192
      // Predicated region
      $region37: #{tpu_custom_call.1} parent=5 // pred_check
        _
      $region38: #{tpu_custom_call.1} parent=5 // pred_check_branch
        %195 = sbr.rel (%p192) target = $region40
      $region39: #{tpu_custom_call.1} parent=5 // pred_region
        %s196 = ssub.s32 %s14, 1
        %s197 = smul.u32 8, %s19
        %p198 = scmp.lt.s32.totalorder %s197, 15
        %s199 = scalar_select %p198, %s197, 15
        %s200 = smul.addr %s199, 8
        %s201 = scalar_lea.vmem %s0, %s200
        %p202 = pneg %p40
        %p203 = pneg %p37
        %p204 = pneg %p61
        %p205 = pneg %p58
        %p206 = pneg %p82
        %p207 = pneg %p79
        %p208 = pneg %p103
        %p209 = pneg %p100
        %p210 = pneg %p124
        %p211 = pneg %p121
        %p212 = pneg %p150
        %p213 = pneg %p147
        %s214 = sand.u32 %s137, 1
        %s215 = scalar_lea.sflag [#allocation3], %s214
        %s216 = sand.u32 %s137, 1
        %s217 = smul.addr %s216, 64
        %s218 = scalar_lea.vmem [#allocation2], %s217
        %s219 = smul.u32 8, %s19
        %p220 = scmp.lt.s32.totalorder %s219, 15
        %s221 = scalar_select %p220, %s219, 15
        %s222 = smul.addr %s221, 8
        %s223 = scalar_lea.vmem %s0, %s222
        %s224 = smul.u32 8, %s19
        %s225 = smul.u32 8, %s19
        %v226 = vld [vmem:[%s223] sm:$0xff]
        %v227 = vld [vmem:[%s223 + $0x8] sm:$0xff]
        %v228 = vld [vmem:[%s223 + $0x10] sm:$0xff]
        %v229 = vld [vmem:[%s223 + $0x18] sm:$0xff]
        %v230 = vld [vmem:[%s223 + $0x20] sm:$0xff]
        %v231 = vld [vmem:[%s223 + $0x28] sm:$0xff]
        %v232 = vld [vmem:[%s223 + $0x30] sm:$0xff]
        %v233 = vld [vmem:[%s223 + $0x38] sm:$0xff]
        %v234 = vld [vmem:[%s1] sm:$0xff]
        %v235 = vld [vmem:[%s1 + $0x8] sm:$0xff]
        %v236 = vld [vmem:[%s1 + $0x10] sm:$0xff]
        %v237 = vld [vmem:[%s1 + $0x18] sm:$0xff]
        %v238 = vld [vmem:[%s1 + $0x20] sm:$0xff]
        %v239 = vld [vmem:[%s1 + $0x28] sm:$0xff]
        %v240 = vld [vmem:[%s1 + $0x30] sm:$0xff]
        %v241 = vld [vmem:[%s1 + $0x38] sm:$0xff]
        %v242 = vld [vmem:[%s2] sm:$0x1]
        %v244 = vlaneseq
        %v245 = vshrl.u32 %v244, 7
        %v246 = vsub.s32 0, %v245
        %v247 = vrot.slane %v242, %v246
        %vm249 = vcmask 523264
        %v251 = vsel %vm249, %v226, 0
        %v254 = vsel %vm249, %v227, 0
        %v257 = vsel %vm249, %v228, 0
        %v260 = vsel %vm249, %v229, 0
        %v263 = vsel %vm249, %v230, 0
        %v266 = vsel %vm249, %v231, 0
        %v269 = vsel %vm249, %v232, 0
        %v272 = vsel %vm249, %v233, 0
        %274 = vmatprep.subr.mxu0 0.0
        %275 = vmatpush1.msra.mxu0 0.0
        %276 = vmatprep.subr.mxu0 0.0
        %277 = vmatpush1.msra.mxu0 0.0
        %278 = vmatprep.subr.mxu0 0.0
        %279 = vmatpush1.msra.mxu0 0.0
        %280 = vmatprep.subr.mxu0 0.0
        %281 = vmatpush1.msra.mxu0 0.0
        %282 = vmatprep.subr.mxu0 0.0
        %283 = vmatpush1.msra.mxu0 0.0
        %284 = vmatprep.subr.mxu0 0.0
        %285 = vmatpush1.msra.mxu0 0.0
        %286 = vmatprep.subr.mxu0 0.0
        %287 = vmatpush1.msra.mxu0 0.0
        %288 = vmatprep.subr.mxu0 0.0
        %289 = vmatpush1.msra.mxu0 0.0
        %290 = vmatprep.subr.mxu0 0.0
        %291 = vmatpush1.msra.mxu0 %v241
        %292 = vmatprep.subr.mxu0 0.0
        %293 = vmatpush1.msra.mxu0 %v240
        %294 = vmatprep.subr.mxu0 0.0
        %295 = vmatpush1.msra.mxu0 %v239
        %296 = vmatprep.subr.mxu0 0.0
        %297 = vmatpush1.msra.mxu0 %v238
        %298 = vmatprep.subr.mxu0 0.0
        %299 = vmatpush1.msra.mxu0 %v237
        %300 = vmatprep.subr.mxu0 0.0
        %301 = vmatpush1.msra.mxu0 %v236
        %302 = vmatprep.subr.mxu0 0.0
        %303 = vmatpush1.msra.mxu0 %v235
        %304 = vmatprep.subr.mxu0 0.0
        %305 = vmatpush1.msra.mxu0 %v234
        %306 = vmatprep.subr.mxu0 0.0
        %307 = vmatpush2.msra.mxu0 0.0
        %308 = vmatprep.subr.mxu0 0.0
        %309 = vmatpush2.msra.mxu0 0.0
        %310 = vmatprep.subr.mxu0 0.0
        %311 = vmatpush2.msra.mxu0 0.0
        %312 = vmatprep.subr.mxu0 0.0
        %313 = vmatpush2.msra.mxu0 0.0
        %314 = vmatprep.subr.mxu0 0.0
        %315 = vmatpush2.msra.mxu0 0.0
        %316 = vmatprep.subr.mxu0 0.0
        %317 = vmatpush2.msra.mxu0 0.0
        %318 = vmatprep.subr.mxu0 0.0
        %319 = vmatpush2.msra.mxu0 0.0
        %320 = vmatprep.subr.mxu0 0.0
        %321 = vmatpush2.msra.mxu0 0.0
        %322 = vmatprep.subr.mxu0 0.0
        %323 = vmatpush2.msra.mxu0 0.0
        %324 = vmatprep.subr.mxu0 0.0
        %325 = vmatpush2.msra.mxu0 0.0
        %326 = vmatprep.subr.mxu0 0.0
        %327 = vmatpush2.msra.mxu0 0.0
        %328 = vmatprep.subr.mxu0 0.0
        %329 = vmatpush2.msra.mxu0 0.0
        %330 = vmatprep.subr.mxu0 0.0
        %331 = vmatpush2.msra.mxu0 0.0
        %332 = vmatprep.subr.mxu0 0.0
        %333 = vmatpush2.msra.mxu0 0.0
        %334 = vmatprep.subr.mxu0 0.0
        %335 = vmatpush2.msra.mxu0 0.0
        %336 = vmatprep.subr.mxu0 0.0
        %337 = vmatpush2.msra.mxu0 0.0
        %338 = vmatprep.mubr.f32.mxu0 0.0
        %339 = vmatmul.mubr.f32.gmra.mxu0 %v251
        %v340 = vpop.f32.mrf.mxu0
        %v341 = vadd.f32 %v247, %v340
        %v342 = vpop.f32.mrf.mxu0
        %343 = vmatprep.mubr.f32.mxu0 0.0
        %344 = vmatmul.mubr.f32.gmra.mxu0 %v254
        %v345 = vpop.f32.mrf.mxu0
        %v346 = vadd.f32 %v247, %v345
        %v347 = vpop.f32.mrf.mxu0
        %348 = vmatprep.mubr.f32.mxu0 0.0
        %349 = vmatmul.mubr.f32.gmra.mxu0 %v257
        %v350 = vpop.f32.mrf.mxu0
        %v351 = vadd.f32 %v247, %v350
        %v352 = vpop.f32.mrf.mxu0
        %353 = vmatprep.mubr.f32.mxu0 0.0
        %354 = vmatmul.mubr.f32.gmra.mxu0 %v260
        %v355 = vpop.f32.mrf.mxu0
        %v356 = vadd.f32 %v247, %v355
        %v357 = vpop.f32.mrf.mxu0
        %358 = vmatprep.mubr.f32.mxu0 0.0
        %359 = vmatmul.mubr.f32.gmra.mxu0 %v263
        %v360 = vpop.f32.mrf.mxu0
        %v361 = vadd.f32 %v247, %v360
        %v362 = vpop.f32.mrf.mxu0
        %363 = vmatprep.mubr.f32.mxu0 0.0
        %364 = vmatmul.mubr.f32.gmra.mxu0 %v266
        %v365 = vpop.f32.mrf.mxu0
        %v366 = vadd.f32 %v247, %v365
        %v367 = vpop.f32.mrf.mxu0
        %368 = vmatprep.mubr.f32.mxu0 0.0
        %369 = vmatmul.mubr.f32.gmra.mxu0 %v269
        %v370 = vpop.f32.mrf.mxu0
        %v371 = vadd.f32 %v247, %v370
        %v372 = vpop.f32.mrf.mxu0
        %373 = vmatprep.mubr.f32.mxu0 0.0
        %374 = vmatmul.mubr.f32.gmra.mxu0 %v272
        %v375 = vpop.f32.mrf.mxu0
        %v376 = vadd.f32 %v247, %v375
        %v377 = vpop.f32.mrf.mxu0
        %378 = vdwg.mxu0
        %v379 = vmax.f32 %v341, 0.0
        %v380 = vmax.f32 %v346, 0.0
        %v381 = vmax.f32 %v351, 0.0
        %v382 = vmax.f32 %v356, 0.0
        %v383 = vmax.f32 %v361, 0.0
        %v384 = vmax.f32 %v366, 0.0
        %v385 = vmax.f32 %v371, 0.0
        %v386 = vmax.f32 %v376, 0.0
        %v387 = vld [vmem:[%s3] sm:$0xff]
        %v388 = vld [vmem:[%s3 + $0x8] sm:$0xff]
        %v389 = vld [vmem:[%s3 + $0x10] sm:$0xff]
        %v390 = vld [vmem:[%s3 + $0x18] sm:$0xff]
        %v391 = vld [vmem:[%s3 + $0x20] sm:$0xff]
        %v392 = vld [vmem:[%s3 + $0x28] sm:$0xff]
        %v393 = vld [vmem:[%s3 + $0x30] sm:$0xff]
        %v394 = vld [vmem:[%s3 + $0x38] sm:$0xff]
        %v395 = vld [vmem:[%s3 + $0x40] sm:$0xff]
        %v396 = vld [vmem:[%s3 + $0x48] sm:$0xff]
        %v397 = vld [vmem:[%s3 + $0x50] sm:$0xff]
        %v398 = vld [vmem:[%s3 + $0x58] sm:$0xff]
        %v399 = vld [vmem:[%s3 + $0x60] sm:$0xff]
        %v400 = vld [vmem:[%s3 + $0x68] sm:$0xff]
        %v401 = vld [vmem:[%s3 + $0x70] sm:$0xff]
        %v402 = vld [vmem:[%s3 + $0x78] sm:$0xff]
        %v403 = vld [vmem:[%s4] sm:$0x1]
        %v405 = vlaneseq
        %v406 = vshrl.u32 %v405, 7
        %v407 = vsub.s32 0, %v406
        %v408 = vrot.slane %v403, %v407
        %410 = vmatprep.subr.mxu0 0.0
        %411 = vmatpush1.msra.mxu0 %v402
        %412 = vmatprep.subr.mxu0 0.0
        %413 = vmatpush1.msra.mxu0 %v401
        %414 = vmatprep.subr.mxu0 0.0
        %415 = vmatpush1.msra.mxu0 %v400
        %416 = vmatprep.subr.mxu0 0.0
        %417 = vmatpush1.msra.mxu0 %v399
        %418 = vmatprep.subr.mxu0 0.0
        %419 = vmatpush1.msra.mxu0 %v398
        %420 = vmatprep.subr.mxu0 0.0
        %421 = vmatpush1.msra.mxu0 %v397
        %422 = vmatprep.subr.mxu0 0.0
        %423 = vmatpush1.msra.mxu0 %v396
        %424 = vmatprep.subr.mxu0 0.0
        %425 = vmatpush1.msra.mxu0 %v395
        %426 = vmatprep.subr.mxu0 0.0
        %427 = vmatpush1.msra.mxu0 %v394
        %428 = vmatprep.subr.mxu0 0.0
        %429 = vmatpush1.msra.mxu0 %v393
        %430 = vmatprep.subr.mxu0 0.0
        %431 = vmatpush1.msra.mxu0 %v392
        %432 = vmatprep.subr.mxu0 0.0
        %433 = vmatpush1.msra.mxu0 %v391
        %434 = vmatprep.subr.mxu0 0.0
        %435 = vmatpush1.msra.mxu0 %v390
        %436 = vmatprep.subr.mxu0 0.0
        %437 = vmatpush1.msra.mxu0 %v389
        %438 = vmatprep.subr.mxu0 0.0
        %439 = vmatpush1.msra.mxu0 %v388
        %440 = vmatprep.subr.mxu0 0.0
        %441 = vmatpush1.msra.mxu0 %v387
        %442 = vmatprep.subr.mxu0 0.0
        %443 = vmatpush2.msra.mxu0 0.0
        %444 = vmatprep.subr.mxu0 0.0
        %445 = vmatpush2.msra.mxu0 0.0
        %446 = vmatprep.subr.mxu0 0.0
        %447 = vmatpush2.msra.mxu0 0.0
        %448 = vmatprep.subr.mxu0 0.0
        %449 = vmatpush2.msra.mxu0 0.0
        %450 = vmatprep.subr.mxu0 0.0
        %451 = vmatpush2.msra.mxu0 0.0
        %452 = vmatprep.subr.mxu0 0.0
        %453 = vmatpush2.msra.mxu0 0.0
        %454 = vmatprep.subr.mxu0 0.0
        %455 = vmatpush2.msra.mxu0 0.0
        %456 = vmatprep.subr.mxu0 0.0
        %457 = vmatpush2.msra.mxu0 0.0
        %458 = vmatprep.subr.mxu0 0.0
        %459 = vmatpush2.msra.mxu0 0.0
        %460 = vmatprep.subr.mxu0 0.0
        %461 = vmatpush2.msra.mxu0 0.0
        %462 = vmatprep.subr.mxu0 0.0
        %463 = vmatpush2.msra.mxu0 0.0
        %464 = vmatprep.subr.mxu0 0.0
        %465 = vmatpush2.msra.mxu0 0.0
        %466 = vmatprep.subr.mxu0 0.0
        %467 = vmatpush2.msra.mxu0 0.0
        %468 = vmatprep.subr.mxu0 0.0
        %469 = vmatpush2.msra.mxu0 0.0
        %470 = vmatprep.subr.mxu0 0.0
        %471 = vmatpush2.msra.mxu0 0.0
        %472 = vmatprep.subr.mxu0 0.0
        %473 = vmatpush2.msra.mxu0 0.0
        %474 = vmatprep.mubr.f32.mxu0 0.0
        %475 = vmatmul.mubr.f32.gmra.mxu0 %v379
        %v476 = vpop.f32.mrf.mxu0
        %v477 = vadd.f32 %v408, %v476
        %v478 = vpop.f32.mrf.mxu0
        %479 = vmatprep.mubr.f32.mxu0 0.0
        %480 = vmatmul.mubr.f32.gmra.mxu0 %v380
        %v481 = vpop.f32.mrf.mxu0
        %v482 = vadd.f32 %v408, %v481
        %v483 = vpop.f32.mrf.mxu0
        %484 = vmatprep.mubr.f32.mxu0 0.0
        %485 = vmatmul.mubr.f32.gmra.mxu0 %v381
        %v486 = vpop.f32.mrf.mxu0
        %v487 = vadd.f32 %v408, %v486
        %v488 = vpop.f32.mrf.mxu0
        %489 = vmatprep.mubr.f32.mxu0 0.0
        %490 = vmatmul.mubr.f32.gmra.mxu0 %v382
        %v491 = vpop.f32.mrf.mxu0
        %v492 = vadd.f32 %v408, %v491
        %v493 = vpop.f32.mrf.mxu0
        %494 = vmatprep.mubr.f32.mxu0 0.0
        %495 = vmatmul.mubr.f32.gmra.mxu0 %v383
        %v496 = vpop.f32.mrf.mxu0
        %v497 = vadd.f32 %v408, %v496
        %v498 = vpop.f32.mrf.mxu0
        %499 = vmatprep.mubr.f32.mxu0 0.0
        %500 = vmatmul.mubr.f32.gmra.mxu0 %v384
        %v501 = vpop.f32.mrf.mxu0
        %v502 = vadd.f32 %v408, %v501
        %v503 = vpop.f32.mrf.mxu0
        %504 = vmatprep.mubr.f32.mxu0 0.0
        %505 = vmatmul.mubr.f32.gmra.mxu0 %v385
        %v506 = vpop.f32.mrf.mxu0
        %v507 = vadd.f32 %v408, %v506
        %v508 = vpop.f32.mrf.mxu0
        %509 = vmatprep.mubr.f32.mxu0 0.0
        %510 = vmatmul.mubr.f32.gmra.mxu0 %v386
        %v511 = vpop.f32.mrf.mxu0
        %v512 = vadd.f32 %v408, %v511
        %v513 = vpop.f32.mrf.mxu0
        %514 = vdwg.mxu0
        %515 = vst [vmem:[%s218] sm:$0xff] %v477
        %516 = vst [vmem:[%s218 + $0x8] sm:$0xff] %v482
        %517 = vst [vmem:[%s218 + $0x10] sm:$0xff] %v487
        %518 = vst [vmem:[%s218 + $0x18] sm:$0xff] %v492
        %519 = vst [vmem:[%s218 + $0x20] sm:$0xff] %v497
        %520 = vst [vmem:[%s218 + $0x28] sm:$0xff] %v502
        %521 = vst [vmem:[%s218 + $0x30] sm:$0xff] %v507
        %522 = vst [vmem:[%s218 + $0x38] sm:$0xff] %v512
        %s523 = sand.u32 %s137, 1
        %s524 = scalar_lea.sflag [#allocation3], %s523
        %s525 = sand.u32 %s137, 1
        %s526 = smul.addr %s525, 64
        %s527 = scalar_lea.vmem [#allocation2], %s526
        // Predicated region
        $region41: #{tpu_custom_call.1} parent=39 // pred_check
          %p528 = pneg %p147
        $region42: #{tpu_custom_call.1} parent=39 // pred_check_branch
          %530 = sbr.rel (%p528) target = $region44
        $region43: #{tpu_custom_call.1} parent=39 // pred_region
          %s531 = smul.u32 8, %s19
          %s533 = ssub.s32 1024, 1024
          %534 = vsyncadd %s524, %s533
          %s535 = smul.addr %s531, 128
          %s536 = scalar_lea.hbm %s5, %s535
          %s537 = sshll.u32 %s527, 4
          %s538 = int_to_ptr.vmem [resolvable:$true] %s537
          %543 = dma.vmem_to_hbm [thread:$0]  %s538, 1024, %s536, %s524, 128, 128, 8
        $region44: #{tpu_custom_call.1} parent=39 // pred_fallthru
          _
      $region40: #{tpu_custom_call.1} parent=5 // pred_fallthru
        _
      %p544 = scmp.le.s32.totalorder 2, %s14
      // Predicated region
      $region45: #{tpu_custom_call.1} parent=5 // pred_check
        %p545 = pneg %p544
      $region46: #{tpu_custom_call.1} parent=5 // pred_check_branch
        %547 = sbr.rel (%p545) target = $region48
      $region47: #{tpu_custom_call.1} parent=5 // pred_region
        %s548 = ssub.s32 %s14, 2
        // Predicated region
        $region49: #{tpu_custom_call.1} parent=47 // pred_check
          %p549 = pneg %p153
        $region50: #{tpu_custom_call.1} parent=47 // pred_check_branch
          %551 = sbr.rel (%p549) target = $region52
        $region51: #{tpu_custom_call.1} parent=47 // pred_region
          %s552 = sand.u32 %s138, 1
          %s553 = scalar_lea.sflag [#allocation3], %s552
          %s554 = sand.u32 %s138, 1
          %s555 = smul.addr %s554, 64
          %s556 = scalar_lea.vmem [#allocation2], %s555
          %557 = dma.done %s553, 1024
        $region52: #{tpu_custom_call.1} parent=47 // pred_fallthru
          _
      $region48: #{tpu_custom_call.1} parent=5 // pred_fallthru
        _
    $region6: #{tpu_custom_call.1} parent=1 // loop_footer
      %s18 = sadd.s32 1, %s14
    $region7: #{tpu_custom_call.1} parent=1 // loop_footer_branch
      %13 = sbr.rel target = $region3
    $region8: #{tpu_custom_call.1} parent=1 // loop_exit
      _
    %558 = vsyncpa [#allocation3], 1
    %s559 = scalar_lea.sflag [#allocation3], 1
    %560 = vsyncpa %s559, 1

// kernel: tpu_custom_call.1
$region0: #{tpu_custom_call.1}
  #allocation0 [shape = 'u32[]', space=smem, size = 0x4, offset = 0x4, fixed_abs, tag = 'smem constant byte address 0x4 - core index']
  #allocation1 [shape = 'u32[144,128]{1,0:T(1,128)}', space=vmem, size = 0x12000, scoped, tag = 'internal scratch']
  %s0 = inlined_call_operand.vmem [shape: f32[128,64], index: 0, kind: input, shape index: {}]
  %s1 = inlined_call_operand.vmem [shape: f32[64,128], index: 1, kind: input, shape index: {}]
  %s2 = inlined_call_operand.vmem [shape: f32[1,128], index: 2, kind: input, shape index: {}]
  %s3 = inlined_call_operand.vmem [shape: f32[128,128], index: 3, kind: input, shape index: {}]
  %s4 = inlined_call_operand.vmem [shape: f32[1,128], index: 4, kind: input, shape index: {}]
  %s5 = inlined_call_operand.hbm [shape: f32[128,128], index: 5, kind: output, shape index: {}]
  %s6 = sld [smem:[#allocation0]]
  $region53: #{tpu_custom_call.1} parent=0
    _
  %s8 = ssub.s32 1, %s6
  %s9 = scalar_select 0, %s8, %s6
  $region1: #{tpu_custom_call.1} parent=0
    #allocation2 [shape = 'u8[65536]{0}', space=vmem, size = 0x10000, scoped, tag = 'output window, operand 0']
    #allocation3 [shape = 's32[2]{0}', space=sflag, size = 0x8, scoped, tag = 'scoped memory for tpu_custom_call.1']
    %10 = vsyncpa [#allocation3], 0
    %s11 = scalar_lea.sflag [#allocation3], 1
    %12 = vsyncpa %s11, 0
    loop: start=0, step=1, limit=4
    $region2: #{tpu_custom_call.1} parent=1 // loop_pre_header
      _
    $region3: #{tpu_custom_call.1} parent=1 // loop_header
      %s14 = sphi 0, %s18
      %p15 = scmp.ge.s32.totalorder %s14, 4
      %s24 = sphi 0, %s26
      %s27 = sphi 0, %s24
      %s28 = sphi 0, %s27
      %s44 = sphi 0, %s28
      %s48 = sphi 0, %s48
      %s50 = sphi 0, %s48
      %s51 = sphi 0, %s50
      %s65 = sphi 0, %s51
      %s69 = sphi 0, %s69
      %s71 = sphi 0, %s69
      %s72 = sphi 0, %s71
      %s86 = sphi 0, %s72
      %s90 = sphi 0, %s90
      %s92 = sphi 0, %s90
      %s93 = sphi 0, %s92
      %s107 = sphi 0, %s93
      %s111 = sphi 0, %s111
      %s113 = sphi 0, %s111
      %s114 = sphi 0, %s113
      %s128 = sphi 0, %s114
      %s134 = sphi 0, %s136
      %s137 = sphi 0, %s134
      %s138 = sphi 0, %s137
      %s154 = sphi 0, %s138
    $region4: #{tpu_custom_call.1} parent=1 // loop_header_branch
      %17 = sbr.rel (%p15) target = $region8
    $region5: #{tpu_custom_call.1} parent=1 // loop_body
      %s19 = ssub.s32 %s14, 1
      %s20 = ssub.s32 %s14, 2
      %s21 = sadd.s32 %s14, 1
      %s22 = ssub.s32 %s14, %s21
      %p23 = scmp.eq.s32.totalorder %s22, 0
      %s25 = sadd.s32 %s24, 1
      %s26 = scalar_select %p23, %s24, %s25
      %p29 = pneg %p23
      %p30 = scmp.eq.s32.totalorder %s14, 1
      %p31 = por %p29, %p30
      %p32 = scmp.ne.s32.totalorder %s24, %s27
      %p33 = scmp.eq.s32.totalorder %s14, 0
      %p34 = por %p32, %p33
      %p35 = scmp.ne.s32.totalorder %s24, %s27
      %p36 = scmp.eq.s32.totalorder %s19, 1
      %p37 = por %p35, %p36
      %p38 = scmp.ne.s32.totalorder %s27, %s28
      %p39 = scmp.eq.s32.totalorder %s19, 0
      %p40 = por %p38, %p39
      %p41 = scmp.ne.s32.totalorder %s27, %s28
      %p42 = scmp.eq.s32.totalorder %s20, 1
      %p43 = por %p41, %p42
      %p45 = scmp.ne.s32.totalorder %s28, %s44
      %p46 = scmp.eq.s32.totalorder %s20, 0
      %p47 = por %p45, %p46
      %s49 = sadd.s32 %s48, 1
      %p52 = scmp.eq.s32.totalorder %s14, 1
      %p53 = scmp.ne.s32.totalorder %s48, %s50
      %p54 = scmp.eq.s32.totalorder %s14, 0
      %p55 = por %p53, %p54
      %p56 = scmp.ne.s32.totalorder %s48, %s50
      %p57 = scmp.eq.s32.totalorder %s19, 1
      %p58 = por %p56, %p57
      %p59 = scmp.ne.s32.totalorder %s50, %s51
      %p60 = scmp.eq.s32.totalorder %s19, 0
      %p61 = por %p59, %p60
      %p62 = scmp.ne.s32.totalorder %s50, %s51
      %p63 = scmp.eq.s32.totalorder %s20, 1
      %p64 = por %p62, %p63
      %p66 = scmp.ne.s32.totalorder %s51, %s65
      %p67 = scmp.eq.s32.totalorder %s20, 0
      %p68 = por %p66, %p67
      %s70 = sadd.s32 %s69, 1
      %p73 = scmp.eq.s32.totalorder %s14, 1
      %p74 = scmp.ne.s32.totalorder %s69, %s71
      %p75 = scmp.eq.s32.totalorder %s14, 0
      %p76 = por %p74, %p75
      %p77 = scmp.ne.s32.totalorder %s69, %s71
      %p78 = scmp.eq.s32.totalorder %s19, 1
      %p79 = por %p77, %p78
      %p80 = scmp.ne.s32.totalorder %s71, %s72
      %p81 = scmp.eq.s32.totalorder %s19, 0
      %p82 = por %p80, %p81
      %p83 = scmp.ne.s32.totalorder %s71, %s72
      %p84 = scmp.eq.s32.totalorder %s20, 1
      %p85 = por %p83, %p84
      %p87 = scmp.ne.s32.totalorder %s72, %s86
      %p88 = scmp.eq.s32.totalorder %s20, 0
      %p89 = por %p87, %p88
      %s91 = sadd.s32 %s90, 1
      %p94 = scmp.eq.s32.totalorder %s14, 1
      %p95 = scmp.ne.s32.totalorder %s90, %s92
      %p96 = scmp.eq.s32.totalorder %s14, 0
      %p97 = por %p95, %p96
      %p98 = scmp.ne.s32.totalorder %s90, %s92
      %p99 = scmp.eq.s32.totalorder %s19, 1
      %p100 = por %p98, %p99
      %p101 = scmp.ne.s32.totalorder %s92, %s93
      %p102 = scmp.eq.s32.totalorder %s19, 0
      %p103 = por %p101, %p102
      %p104 = scmp.ne.s32.totalorder %s92, %s93
      %p105 = scmp.eq.s32.totalorder %s20, 1
      %p106 = por %p104, %p105
      %p108 = scmp.ne.s32.totalorder %s93, %s107
      %p109 = scmp.eq.s32.totalorder %s20, 0
      %p110 = por %p108, %p109
      %s112 = sadd.s32 %s111, 1
      %p115 = scmp.eq.s32.totalorder %s14, 1
      %p116 = scmp.ne.s32.totalorder %s111, %s113
      %p117 = scmp.eq.s32.totalorder %s14, 0
      %p118 = por %p116, %p117
      %p119 = scmp.ne.s32.totalorder %s111, %s113
      %p120 = scmp.eq.s32.totalorder %s19, 1
      %p121 = por %p119, %p120
      %p122 = scmp.ne.s32.totalorder %s113, %s114
      %p123 = scmp.eq.s32.totalorder %s19, 0
      %p124 = por %p122, %p123
      %p125 = scmp.ne.s32.totalorder %s113, %s114
      %p126 = scmp.eq.s32.totalorder %s20, 1
      %p127 = por %p125, %p126
      %p129 = scmp.ne.s32.totalorder %s114, %s128
      %p130 = scmp.eq.s32.totalorder %s20, 0
      %p131 = por %p129, %p130
      %s132 = ssub.s32 %s14, %s21
      %p133 = scmp.eq.s32.totalorder %s132, 0
      %s135 = sadd.s32 %s134, 1
      %s136 = scalar_select %p133, %s134, %s135
      %p139 = pneg %p133
      %p140 = scmp.eq.s32.totalorder %s14, 1
      %p141 = por %p139, %p140
      %p142 = scmp.ne.s32.totalorder %s134, %s137
      %p143 = scmp.eq.s32.totalorder %s14, 0
      %p144 = por %p142, %p143
      %p145 = scmp.ne.s32.totalorder %s134, %s137
      %p146 = scmp.eq.s32.totalorder %s19, 1
      %p147 = por %p145, %p146
      %p148 = scmp.ne.s32.totalorder %s137, %s138
      %p149 = scmp.eq.s32.totalorder %s19, 0
      %p150 = por %p148, %p149
      %p151 = scmp.ne.s32.totalorder %s137, %s138
      %p152 = scmp.eq.s32.totalorder %s20, 1
      %p153 = por %p151, %p152
      %p155 = scmp.ne.s32.totalorder %s138, %s154
      %p156 = scmp.eq.s32.totalorder %s20, 0
      %p157 = por %p155, %p156
      %p158 = scmp.le.s32.totalorder 1, %s14
      %p159 = scmp.lt.s32.totalorder %s14, 3
      %p160 = pnand %p158, %p159
      %p161 = pneg %p160
      // Predicated region
      $region9: #{tpu_custom_call.1} parent=5 // pred_check
        _
      $region10: #{tpu_custom_call.1} parent=5 // pred_check_branch
        %163 = sbr.rel (%p160) target = $region12
      $region11: #{tpu_custom_call.1} parent=5 // pred_region
        %s164 = ssub.s32 %s14, 1
        // Predicated region
        $region13: #{tpu_custom_call.1} parent=11 // pred_check
          %p165 = pneg %p61
        $region14: #{tpu_custom_call.1} parent=11 // pred_check_branch
          %167 = sbr.rel (%p165) target = $region16
        $region15: #{tpu_custom_call.1} parent=11 // pred_region
          _
        $region16: #{tpu_custom_call.1} parent=11 // pred_fallthru
          _
        // Predicated region
        $region17: #{tpu_custom_call.1} parent=11 // pred_check
          %p168 = pneg %p82
        $region18: #{tpu_custom_call.1} parent=11 // pred_check_branch
          %170 = sbr.rel (%p168) target = $region20
        $region19: #{tpu_custom_call.1} parent=11 // pred_region
          _
        $region20: #{tpu_custom_call.1} parent=11 // pred_fallthru
          _
        // Predicated region
        $region21: #{tpu_custom_call.1} parent=11 // pred_check
          %p171 = pneg %p103
        $region22: #{tpu_custom_call.1} parent=11 // pred_check_branch
          %173 = sbr.rel (%p171) target = $region24
        $region23: #{tpu_custom_call.1} parent=11 // pred_region
          _
        $region24: #{tpu_custom_call.1} parent=11 // pred_fallthru
          _
        // Predicated region
        $region25: #{tpu_custom_call.1} parent=11 // pred_check
          %p174 = pneg %p124
        $region26: #{tpu_custom_call.1} parent=11 // pred_check_branch
          %176 = sbr.rel (%p174) target = $region28
        $region27: #{tpu_custom_call.1} parent=11 // pred_region
          _
        $region28: #{tpu_custom_call.1} parent=11 // pred_fallthru
          _
      $region12: #{tpu_custom_call.1} parent=5 // pred_fallthru
        _
      %p177 = scmp.lt.s32.totalorder %s14, 2
      // Predicated region
      $region29: #{tpu_custom_call.1} parent=5 // pred_check
        %p178 = pneg %p177
      $region30: #{tpu_custom_call.1} parent=5 // pred_check_branch
        %180 = sbr.rel (%p178) target = $region32
      $region31: #{tpu_custom_call.1} parent=5 // pred_region
        // Predicated region
        $region33: #{tpu_custom_call.1} parent=31 // pred_check
          %p181 = pneg %p34
        $region34: #{tpu_custom_call.1} parent=31 // pred_check_branch
          %183 = sbr.rel (%p181) target = $region36
        $region35: #{tpu_custom_call.1} parent=31 // pred_region
          %s184 = smul.u32 8, %s14
          %p185 = scmp.lt.s32.totalorder %s184, 15
          %s186 = scalar_select %p185, %s184, 15
          %s187 = smul.addr %s186, 8
          %s188 = scalar_lea.vmem %s0, %s187
          %s189 = smul.u32 8, %s14
        $region36: #{tpu_custom_call.1} parent=31 // pred_fallthru
          _
      $region32: #{tpu_custom_call.1} parent=5 // pred_fallthru
        _
      %p190 = scmp.le.s32.totalorder 1, %s14
      %p191 = scmp.lt.s32.totalorder %s14, 3
      %p192 = pnand %p190, %p191
      %p193 = pneg %p192
      // Predicated region
      $region37: #{tpu_custom_call.1} parent=5 // pred_check
        _
      $region38: #{tpu_custom_call.1} parent=5 // pred_check_branch
        %195 = sbr.rel (%p192) target = $region40
      $region39: #{tpu_custom_call.1} parent=5 // pred_region
        %s196 = ssub.s32 %s14, 1
        %s197 = smul.u32 8, %s19
        %p198 = scmp.lt.s32.totalorder %s197, 15
        %s199 = scalar_select %p198, %s197, 15
        %s200 = smul.addr %s199, 8
        %s201 = scalar_lea.vmem %s0, %s200
        %p202 = pneg %p40
        %p203 = pneg %p37
        %p204 = pneg %p61
        %p205 = pneg %p58
        %p206 = pneg %p82
        %p207 = pneg %p79
        %p208 = pneg %p103
        %p209 = pneg %p100
        %p210 = pneg %p124
        %p211 = pneg %p121
        %p212 = pneg %p150
        %p213 = pneg %p147
        %s214 = sand.u32 %s137, 1
        %s215 = scalar_lea.sflag [#allocation3], %s214
        %s216 = sand.u32 %s137, 1
        %s217 = smul.addr %s216, 64
        %s218 = scalar_lea.vmem [#allocation2], %s217
        %s219 = smul.u32 8, %s19
        %p220 = scmp.lt.s32.totalorder %s219, 15
        %s221 = scalar_select %p220, %s219, 15
        %s222 = smul.addr %s221, 8
        %s223 = scalar_lea.vmem %s0, %s222
        %s224 = smul.u32 8, %s19
        %s225 = smul.u32 8, %s19
        %v226 = vld [vmem:[%s223] sm:$0xff]
        %v227 = vld [vmem:[%s223 + $0x8] sm:$0xff]
        %v228 = vld [vmem:[%s223 + $0x10] sm:$0xff]
        %v229 = vld [vmem:[%s223 + $0x18] sm:$0xff]
        %v230 = vld [vmem:[%s223 + $0x20] sm:$0xff]
        %v231 = vld [vmem:[%s223 + $0x28] sm:$0xff]
        %v232 = vld [vmem:[%s223 + $0x30] sm:$0xff]
        %v233 = vld [vmem:[%s223 + $0x38] sm:$0xff]
        %v234 = vld [vmem:[%s1] sm:$0xff]
        %v235 = vld [vmem:[%s1 + $0x8] sm:$0xff]
        %v236 = vld [vmem:[%s1 + $0x10] sm:$0xff]
        %v237 = vld [vmem:[%s1 + $0x18] sm:$0xff]
        %v238 = vld [vmem:[%s1 + $0x20] sm:$0xff]
        %v239 = vld [vmem:[%s1 + $0x28] sm:$0xff]
        %v240 = vld [vmem:[%s1 + $0x30] sm:$0xff]
        %v241 = vld [vmem:[%s1 + $0x38] sm:$0xff]
        %v242 = vld [vmem:[%s2] sm:$0x1]
        %v244 = vlaneseq
        %v245 = vshrl.u32 %v244, 7
        %v246 = vsub.s32 0, %v245
        %v247 = vrot.slane %v242, %v246
        %vm249 = vcmask 523264
        %v251 = vsel %vm249, %v226, 0
        %v254 = vsel %vm249, %v227, 0
        %v257 = vsel %vm249, %v228, 0
        %v260 = vsel %vm249, %v229, 0
        %v263 = vsel %vm249, %v230, 0
        %v266 = vsel %vm249, %v231, 0
        %v269 = vsel %vm249, %v232, 0
        %v272 = vsel %vm249, %v233, 0
        %274 = vmatprep.subr.mxu0 0.0
        %275 = vmatpush1.msra.mxu0 0.0
        %276 = vmatprep.subr.mxu0 0.0
        %277 = vmatpush1.msra.mxu0 0.0
        %278 = vmatprep.subr.mxu0 0.0
        %279 = vmatpush1.msra.mxu0 0.0
        %280 = vmatprep.subr.mxu0 0.0
        %281 = vmatpush1.msra.mxu0 0.0
        %282 = vmatprep.subr.mxu0 0.0
        %283 = vmatpush1.msra.mxu0 0.0
        %284 = vmatprep.subr.mxu0 0.0
        %285 = vmatpush1.msra.mxu0 0.0
        %286 = vmatprep.subr.mxu0 0.0
        %287 = vmatpush1.msra.mxu0 0.0
        %288 = vmatprep.subr.mxu0 0.0
        %289 = vmatpush1.msra.mxu0 0.0
        %290 = vmatprep.subr.mxu0 0.0
        %291 = vmatpush1.msra.mxu0 %v241
        %292 = vmatprep.subr.mxu0 0.0
        %293 = vmatpush1.msra.mxu0 %v240
        %294 = vmatprep.subr.mxu0 0.0
        %295 = vmatpush1.msra.mxu0 %v239
        %296 = vmatprep.subr.mxu0 0.0
        %297 = vmatpush1.msra.mxu0 %v238
        %298 = vmatprep.subr.mxu0 0.0
        %299 = vmatpush1.msra.mxu0 %v237
        %300 = vmatprep.subr.mxu0 0.0
        %301 = vmatpush1.msra.mxu0 %v236
        %302 = vmatprep.subr.mxu0 0.0
        %303 = vmatpush1.msra.mxu0 %v235
        %304 = vmatprep.subr.mxu0 0.0
        %305 = vmatpush1.msra.mxu0 %v234
        %306 = vmatprep.subr.mxu0 0.0
        %307 = vmatpush2.msra.mxu0 0.0
        %308 = vmatprep.subr.mxu0 0.0
        %309 = vmatpush2.msra.mxu0 0.0
        %310 = vmatprep.subr.mxu0 0.0
        %311 = vmatpush2.msra.mxu0 0.0
        %312 = vmatprep.subr.mxu0 0.0
        %313 = vmatpush2.msra.mxu0 0.0
        %314 = vmatprep.subr.mxu0 0.0
        %315 = vmatpush2.msra.mxu0 0.0
        %316 = vmatprep.subr.mxu0 0.0
        %317 = vmatpush2.msra.mxu0 0.0
        %318 = vmatprep.subr.mxu0 0.0
        %319 = vmatpush2.msra.mxu0 0.0
        %320 = vmatprep.subr.mxu0 0.0
        %321 = vmatpush2.msra.mxu0 0.0
        %322 = vmatprep.subr.mxu0 0.0
        %323 = vmatpush2.msra.mxu0 0.0
        %324 = vmatprep.subr.mxu0 0.0
        %325 = vmatpush2.msra.mxu0 0.0
        %326 = vmatprep.subr.mxu0 0.0
        %327 = vmatpush2.msra.mxu0 0.0
        %328 = vmatprep.subr.mxu0 0.0
        %329 = vmatpush2.msra.mxu0 0.0
        %330 = vmatprep.subr.mxu0 0.0
        %331 = vmatpush2.msra.mxu0 0.0
        %332 = vmatprep.subr.mxu0 0.0
        %333 = vmatpush2.msra.mxu0 0.0
        %334 = vmatprep.subr.mxu0 0.0
        %335 = vmatpush2.msra.mxu0 0.0
        %336 = vmatprep.subr.mxu0 0.0
        %337 = vmatpush2.msra.mxu0 0.0
        %338 = vmatprep.mubr.f32.mxu0 0.0
        %339 = vmatmul.mubr.f32.gmra.mxu0 %v251
        %v340 = vpop.f32.mrf.mxu0
        %v341 = vadd.f32 %v247, %v340
        %v342 = vpop.f32.mrf.mxu0
        %343 = vmatprep.mubr.f32.mxu0 0.0
        %344 = vmatmul.mubr.f32.gmra.mxu0 %v254
        %v345 = vpop.f32.mrf.mxu0
        %v346 = vadd.f32 %v247, %v345
        %v347 = vpop.f32.mrf.mxu0
        %348 = vmatprep.mubr.f32.mxu0 0.0
        %349 = vmatmul.mubr.f32.gmra.mxu0 %v257
        %v350 = vpop.f32.mrf.mxu0
        %v351 = vadd.f32 %v247, %v350
        %v352 = vpop.f32.mrf.mxu0
        %353 = vmatprep.mubr.f32.mxu0 0.0
        %354 = vmatmul.mubr.f32.gmra.mxu0 %v260
        %v355 = vpop.f32.mrf.mxu0
        %v356 = vadd.f32 %v247, %v355
        %v357 = vpop.f32.mrf.mxu0
        %358 = vmatprep.mubr.f32.mxu0 0.0
        %359 = vmatmul.mubr.f32.gmra.mxu0 %v263
        %v360 = vpop.f32.mrf.mxu0
        %v361 = vadd.f32 %v247, %v360
        %v362 = vpop.f32.mrf.mxu0
        %363 = vmatprep.mubr.f32.mxu0 0.0
        %364 = vmatmul.mubr.f32.gmra.mxu0 %v266
        %v365 = vpop.f32.mrf.mxu0
        %v366 = vadd.f32 %v247, %v365
        %v367 = vpop.f32.mrf.mxu0
        %368 = vmatprep.mubr.f32.mxu0 0.0
        %369 = vmatmul.mubr.f32.gmra.mxu0 %v269
        %v370 = vpop.f32.mrf.mxu0
        %v371 = vadd.f32 %v247, %v370
        %v372 = vpop.f32.mrf.mxu0
        %373 = vmatprep.mubr.f32.mxu0 0.0
        %374 = vmatmul.mubr.f32.gmra.mxu0 %v272
        %v375 = vpop.f32.mrf.mxu0
        %v376 = vadd.f32 %v247, %v375
        %v377 = vpop.f32.mrf.mxu0
        %378 = vdwg.mxu0
        %v379 = vmax.f32 %v341, 0.0
        %v380 = vmax.f32 %v346, 0.0
        %v381 = vmax.f32 %v351, 0.0
        %v382 = vmax.f32 %v356, 0.0
        %v383 = vmax.f32 %v361, 0.0
        %v384 = vmax.f32 %v366, 0.0
        %v385 = vmax.f32 %v371, 0.0
        %v386 = vmax.f32 %v376, 0.0
        %v387 = vld [vmem:[%s3] sm:$0xff]
        %v388 = vld [vmem:[%s3 + $0x8] sm:$0xff]
        %v389 = vld [vmem:[%s3 + $0x10] sm:$0xff]
        %v390 = vld [vmem:[%s3 + $0x18] sm:$0xff]
        %v391 = vld [vmem:[%s3 + $0x20] sm:$0xff]
        %v392 = vld [vmem:[%s3 + $0x28] sm:$0xff]
        %v393 = vld [vmem:[%s3 + $0x30] sm:$0xff]
        %v394 = vld [vmem:[%s3 + $0x38] sm:$0xff]
        %v395 = vld [vmem:[%s3 + $0x40] sm:$0xff]
        %v396 = vld [vmem:[%s3 + $0x48] sm:$0xff]
        %v397 = vld [vmem:[%s3 + $0x50] sm:$0xff]
        %v398 = vld [vmem:[%s3 + $0x58] sm:$0xff]
        %v399 = vld [vmem:[%s3 + $0x60] sm:$0xff]
        %v400 = vld [vmem:[%s3 + $0x68] sm:$0xff]
        %v401 = vld [vmem:[%s3 + $0x70] sm:$0xff]
        %v402 = vld [vmem:[%s3 + $0x78] sm:$0xff]
        %v403 = vld [vmem:[%s4] sm:$0x1]
        %v405 = vlaneseq
        %v406 = vshrl.u32 %v405, 7
        %v407 = vsub.s32 0, %v406
        %v408 = vrot.slane %v403, %v407
        %410 = vmatprep.subr.mxu0 0.0
        %411 = vmatpush1.msra.mxu0 %v402
        %412 = vmatprep.subr.mxu0 0.0
        %413 = vmatpush1.msra.mxu0 %v401
        %414 = vmatprep.subr.mxu0 0.0
        %415 = vmatpush1.msra.mxu0 %v400
        %416 = vmatprep.subr.mxu0 0.0
        %417 = vmatpush1.msra.mxu0 %v399
        %418 = vmatprep.subr.mxu0 0.0
        %419 = vmatpush1.msra.mxu0 %v398
        %420 = vmatprep.subr.mxu0 0.0
        %421 = vmatpush1.msra.mxu0 %v397
        %422 = vmatprep.subr.mxu0 0.0
        %423 = vmatpush1.msra.mxu0 %v396
        %424 = vmatprep.subr.mxu0 0.0
        %425 = vmatpush1.msra.mxu0 %v395
        %426 = vmatprep.subr.mxu0 0.0
        %427 = vmatpush1.msra.mxu0 %v394
        %428 = vmatprep.subr.mxu0 0.0
        %429 = vmatpush1.msra.mxu0 %v393
        %430 = vmatprep.subr.mxu0 0.0
        %431 = vmatpush1.msra.mxu0 %v392
        %432 = vmatprep.subr.mxu0 0.0
        %433 = vmatpush1.msra.mxu0 %v391
        %434 = vmatprep.subr.mxu0 0.0
        %435 = vmatpush1.msra.mxu0 %v390
        %436 = vmatprep.subr.mxu0 0.0
        %437 = vmatpush1.msra.mxu0 %v389
        %438 = vmatprep.subr.mxu0 0.0
        %439 = vmatpush1.msra.mxu0 %v388
        %440 = vmatprep.subr.mxu0 0.0
        %441 = vmatpush1.msra.mxu0 %v387
        %442 = vmatprep.subr.mxu0 0.0
        %443 = vmatpush2.msra.mxu0 0.0
        %444 = vmatprep.subr.mxu0 0.0
        %445 = vmatpush2.msra.mxu0 0.0
        %446 = vmatprep.subr.mxu0 0.0
        %447 = vmatpush2.msra.mxu0 0.0
        %448 = vmatprep.subr.mxu0 0.0
        %449 = vmatpush2.msra.mxu0 0.0
        %450 = vmatprep.subr.mxu0 0.0
        %451 = vmatpush2.msra.mxu0 0.0
        %452 = vmatprep.subr.mxu0 0.0
        %453 = vmatpush2.msra.mxu0 0.0
        %454 = vmatprep.subr.mxu0 0.0
        %455 = vmatpush2.msra.mxu0 0.0
        %456 = vmatprep.subr.mxu0 0.0
        %457 = vmatpush2.msra.mxu0 0.0
        %458 = vmatprep.subr.mxu0 0.0
        %459 = vmatpush2.msra.mxu0 0.0
        %460 = vmatprep.subr.mxu0 0.0
        %461 = vmatpush2.msra.mxu0 0.0
        %462 = vmatprep.subr.mxu0 0.0
        %463 = vmatpush2.msra.mxu0 0.0
        %464 = vmatprep.subr.mxu0 0.0
        %465 = vmatpush2.msra.mxu0 0.0
        %466 = vmatprep.subr.mxu0 0.0
        %467 = vmatpush2.msra.mxu0 0.0
        %468 = vmatprep.subr.mxu0 0.0
        %469 = vmatpush2.msra.mxu0 0.0
        %470 = vmatprep.subr.mxu0 0.0
        %471 = vmatpush2.msra.mxu0 0.0
        %472 = vmatprep.subr.mxu0 0.0
        %473 = vmatpush2.msra.mxu0 0.0
        %474 = vmatprep.mubr.f32.mxu0 0.0
        %475 = vmatmul.mubr.f32.gmra.mxu0 %v379
        %v476 = vpop.f32.mrf.mxu0
        %v477 = vadd.f32 %v408, %v476
        %v478 = vpop.f32.mrf.mxu0
        %479 = vmatprep.mubr.f32.mxu0 0.0
        %480 = vmatmul.mubr.f32.gmra.mxu0 %v380
        %v481 = vpop.f32.mrf.mxu0
        %v482 = vadd.f32 %v408, %v481
        %v483 = vpop.f32.mrf.mxu0
        %484 = vmatprep.mubr.f32.mxu0 0.0
        %485 = vmatmul.mubr.f32.gmra.mxu0 %v381
        %v486 = vpop.f32.mrf.mxu0
        %v487 = vadd.f32 %v408, %v486
        %v488 = vpop.f32.mrf.mxu0
        %489 = vmatprep.mubr.f32.mxu0 0.0
        %490 = vmatmul.mubr.f32.gmra.mxu0 %v382
        %v491 = vpop.f32.mrf.mxu0
        %v492 = vadd.f32 %v408, %v491
        %v493 = vpop.f32.mrf.mxu0
        %494 = vmatprep.mubr.f32.mxu0 0.0
        %495 = vmatmul.mubr.f32.gmra.mxu0 %v383
        %v496 = vpop.f32.mrf.mxu0
        %v497 = vadd.f32 %v408, %v496
        %v498 = vpop.f32.mrf.mxu0
        %499 = vmatprep.mubr.f32.mxu0 0.0
        %500 = vmatmul.mubr.f32.gmra.mxu0 %v384
        %v501 = vpop.f32.mrf.mxu0
        %v502 = vadd.f32 %v408, %v501
        %v503 = vpop.f32.mrf.mxu0
        %504 = vmatprep.mubr.f32.mxu0 0.0
        %505 = vmatmul.mubr.f32.gmra.mxu0 %v385
        %v506 = vpop.f32.mrf.mxu0
        %v507 = vadd.f32 %v408, %v506
        %v508 = vpop.f32.mrf.mxu0
        %509 = vmatprep.mubr.f32.mxu0 0.0
        %510 = vmatmul.mubr.f32.gmra.mxu0 %v386
        %v511 = vpop.f32.mrf.mxu0
        %v512 = vadd.f32 %v408, %v511
        %v513 = vpop.f32.mrf.mxu0
        %514 = vdwg.mxu0
        %515 = vst [vmem:[%s218] sm:$0xff] %v477
        %516 = vst [vmem:[%s218 + $0x8] sm:$0xff] %v482
        %517 = vst [vmem:[%s218 + $0x10] sm:$0xff] %v487
        %518 = vst [vmem:[%s218 + $0x18] sm:$0xff] %v492
        %519 = vst [vmem:[%s218 + $0x20] sm:$0xff] %v497
        %520 = vst [vmem:[%s218 + $0x28] sm:$0xff] %v502
        %521 = vst [vmem:[%s218 + $0x30] sm:$0xff] %v507
        %522 = vst [vmem:[%s218 + $0x38] sm:$0xff] %v512
        %s523 = sand.u32 %s137, 1
        %s524 = scalar_lea.sflag [#allocation3], %s523
        %s525 = sand.u32 %s137, 1
        %s526 = smul.addr %s525, 64
        %s527 = scalar_lea.vmem [#allocation2], %s526
        // Predicated region
        $region41: #{tpu_custom_call.1} parent=39 // pred_check
          %p528 = pneg %p147
        $region42: #{tpu_custom_call.1} parent=39 // pred_check_branch
          %530 = sbr.rel (%p528) target = $region44
        $region43: #{tpu_custom_call.1} parent=39 // pred_region
          %s531 = smul.u32 8, %s19
          %s533 = ssub.s32 1024, 1024
          %534 = vsyncadd %s524, %s533
          %s535 = smul.addr %s531, 128
          %s536 = scalar_lea.hbm %s5, %s535
          %s537 = sshll.u32 %s527, 4
          %s538 = int_to_ptr.vmem [resolvable:$true] %s537
          %543 = dma.vmem_to_hbm [thread:$0]  %s538, 1024, %s536, %s524, 128, 128, 8
        $region44: #{tpu_custom_call.1} parent=39 // pred_fallthru
          _
      $region40: #{tpu_custom_call.1} parent=5 // pred_fallthru
        _
      %p544 = scmp.le.s32.totalorder 2, %s14
      // Predicated region
      $region45: #{tpu_custom_call.1} parent=5 // pred_check
        %p545 = pneg %p544
      $region46: #{tpu_custom_call.1} parent=5 // pred_check_branch
        %547 = sbr.rel (%p545) target = $region48
      $region47: #{tpu_custom_call.1} parent=5 // pred_region
        %s548 = ssub.s32 %s14, 2
        // Predicated region
        $region49: #{tpu_custom_call.1} parent=47 // pred_check
          %p549 = pneg %p153
        $region50: #{tpu_custom_call.1} parent=47 // pred_check_branch
          %551 = sbr.rel (%p549) target = $region52
        $region51: #{tpu_custom_call.1} parent=47 // pred_region
          %s552 = sand.u32 %s138, 1
          %s553 = scalar_lea.sflag [#allocation3], %s552
          %s554 = sand.u32 %s138, 1
          %s555 = smul.addr %s554, 64
          %s556 = scalar_lea.vmem [#allocation2], %s555
          %557 = dma.done %s553, 1024
        $region52: #{tpu_custom_call.1} parent=47 // pred_fallthru
          _
      $region48: #{tpu_custom_call.1} parent=5 // pred_fallthru
        _
    $region6: #{tpu_custom_call.1} parent=1 // loop_footer
      %s18 = sadd.s32 1, %s14
    $region7: #{tpu_custom_call.1} parent=1 // loop_footer_branch
      %13 = sbr.rel target = $region3
    $region8: #{tpu_custom_call.1} parent=1 // loop_exit
      _
    %558 = vsyncpa [#allocation3], 1
    %s559 = scalar_lea.sflag [#allocation3], 1
    %560 = vsyncpa %s559, 1

</llo_original>
